<compile_context>
chip_gen: v7x
topology: tpu7x:2x2x1
jax: 0.10.0
libtpu: 0.0.40
codegen_flags: <defaults>
</compile_context>

<pallas_src>
import jax
import jax.numpy as jnp
from jax.experimental import pallas as pl
from jax.experimental.pallas import tpu as pltpu


# ------------------------------ param packing -------------------------------

def _round8(n):
    return (n + 7) // 8 * 8


def init_params(key, obs_dim, num_hidden):
    """PyTorch-layout parameters: weight (out, in), bias (out,)."""
    ks = jax.random.split(key, 8)
    f32 = jnp.float32

    def w(k, shape, scale=0.1):
        return (scale * jax.random.normal(k, shape)).astype(f32)

    return {
        "w1": w(ks[0], (num_hidden, 2 * obs_dim)), "b1": w(ks[1], (num_hidden,)),
        "w2": w(ks[2], (num_hidden, num_hidden)),  "b2": w(ks[3], (num_hidden,)),
        "w3": w(ks[4], (num_hidden, num_hidden)),  "b3": w(ks[5], (num_hidden,)),
        "w4": w(ks[6], (1, num_hidden)),           "b4": w(ks[7], (1,)),
    }


def prepare_params(params):
    """One-time layout: transpose to (in, out) and pack everything into a single
    sublane-aligned (rows, H) f32 buffer.  Offsets are static Python ints."""
    H = params["b1"].shape[0]
    D2 = params["w1"].shape[1]          # 2 * obs_dim

    sections = [
        params["w1"].T.astype(jnp.float32),          # (2D, H)
        params["w2"].T.astype(jnp.float32),          # (H, H)
        params["w3"].T.astype(jnp.float32),          # (H, H)
        params["w4"].reshape(1, H).astype(jnp.float32),
        params["b1"].reshape(1, H).astype(jnp.float32),
        params["b2"].reshape(1, H).astype(jnp.float32),
        params["b3"].reshape(1, H).astype(jnp.float32),
        params["b4"].reshape(1, 1).astype(jnp.float32),
    ]

    offsets, rows = [], 0
    for s in sections:
        offsets.append(rows)
        rows += _round8(s.shape[0])

    packed = jnp.zeros((rows, H), jnp.float32)
    for s, off in zip(sections, offsets):
        packed = packed.at[off:off + s.shape[0], :s.shape[1]].set(s)

    return {"packed": packed, "offsets": tuple(offsets), "dims": (D2, H)}


# ------------------------------ Pallas kernel --------------------------------

def value_network_mf(prepared, obs, nearby_obs):
    """obs: (B, D), nearby_obs: (B, D) -> value: (B, 1). One fused kernel."""
    o_w1, o_w2, o_w3, o_w4, o_b1, o_b2, o_b3, o_b4 = prepared["offsets"]
    D2, H = prepared["dims"]
    packed = prepared["packed"]

    B = obs.shape[0]
    TB = B if B <= 256 else 256                     # batch tile (rows per step)

    # The only per-call layout op: cat(obs, nearby_obs) on the last axis.
    x = jnp.concatenate([obs, nearby_obs], axis=1)  # (B, 2D)

    def kernel(x_ref, p_ref, o_ref):
        # Layer 1
        h = jnp.dot(x_ref[...], p_ref[o_w1:o_w1 + D2, :],
                    preferred_element_type=jnp.float32)
        h = jnp.maximum(h + p_ref[o_b1:o_b1 + 1, :], 0.0)
        # Layer 2
        h = jnp.dot(h, p_ref[o_w2:o_w2 + H, :],
                    preferred_element_type=jnp.float32)
        h = jnp.maximum(h + p_ref[o_b2:o_b2 + 1, :], 0.0)
        # Layer 3
        h = jnp.dot(h, p_ref[o_w3:o_w3 + H, :],
                    preferred_element_type=jnp.float32)
        h = jnp.maximum(h + p_ref[o_b3:o_b3 + 1, :], 0.0)
        # Layer 4: Linear(H, 1) as VPU multiply + lane reduction.
        v = jnp.sum(h * p_ref[o_w4:o_w4 + 1, :], axis=1, keepdims=True)
        v = v + p_ref[o_b4:o_b4 + 1, 0:1]
        o_ref[...] = v.astype(o_ref.dtype)

    flops = 2 * B * (D2 * H + 2 * H * H + H)
    bytes_accessed = 4 * (B * D2 + packed.size + B)

    return pl.pallas_call(
        kernel,
        out_shape=jax.ShapeDtypeStruct((B, 1), obs.dtype),
        grid=(pl.cdiv(B, TB),),
        in_specs=[
            pl.BlockSpec((TB, D2), lambda i: (i, 0)),                 # activations
            pl.BlockSpec(memory_space=pltpu.MemorySpace.VMEM),        # packed params
        ],
        out_specs=pl.BlockSpec((TB, 1), lambda i: (i, 0)),
        compiler_params=pltpu.CompilerParams(
            dimension_semantics=("parallel",)),
        cost_estimate=pl.CostEstimate(
            flops=flops, transcendentals=0, bytes_accessed=bytes_accessed),
    )(x, packed)


# ------------------------------- reference -----------------------------------

def _reference(params, obs, nearby_obs):
    x = jnp.concatenate([obs, nearby_obs], axis=1)
    h = jnp.maximum(x @ params["w1"].T + params["b1"], 0.0)
    h = jnp.maximum(h @ params["w2"].T + params["b2"], 0.0)
    h = jnp.maximum(h @ params["w3"].T + params["b3"], 0.0)
    return h @ params["w4"].T + params["b4"]


# ---------------------------------- main --------------------------------------

if __name__ == "__main__":
    # args: obs_dim=8, policy_num_hidden=32, batch=2
    B, OBS_DIM, NUM_HIDDEN = 2, 8, 32

    key = jax.random.PRNGKey(0)
    k_obs, k_nobs, k_par = jax.random.split(key, 3)

    obs = jax.random.normal(k_obs, (B, OBS_DIM), jnp.float32)
    nearby_obs = jax.random.normal(k_nobs, (B, OBS_DIM), jnp.float32)

    params = init_params(k_par, OBS_DIM, NUM_HIDDEN)
    prepared = prepare_params(params)               # one-time layout + packing

    out = value_network_mf(prepared, obs, nearby_obs)
    out = jax.block_until_ready(out)
    assert out.shape == (B, 1), out.shape

    ref = jax.block_until_ready(_reference(params, obs, nearby_obs))
    assert jnp.allclose(out, ref, rtol=1e-4, atol=1e-4), (out, ref)

    print("KERNEL_OK")
</pallas_src>

<mosaic_0001>
module attributes {stable_mosaic.version = 11 : i64} {
  func.func @kernel(%arg0: i32, %arg1: memref<2x16xf32, #tpu.memory_space<vmem>>, %arg2: memref<120x32xf32, #tpu.memory_space<vmem>>, %arg3: memref<2x1xf32, #tpu.memory_space<vmem>>) attributes {dimension_semantics = [#tpu.dimension_semantics<parallel>], iteration_bounds = array<i64: 1>, scalar_prefetch = 0 : i64, scratch_operands = 0 : i64, tpu.core_type = #tpu.core_type<tc>, window_params = [{transform_indices = @transform_0, window_bounds = array<i64: 2, 16>}, {pipeline_mode = #tpu.pipeline_mode<synchronous>, transform_indices = @transform_1, window_bounds = array<i64: 120, 32>}, {transform_indices = @transform_2, window_bounds = array<i64: 2, 1>}]} {
    %c0 = arith.constant 0 : index
    %c0_0 = arith.constant 0 : index
    %0 = vector.load %arg1[%c0, %c0_0] : memref<2x16xf32, #tpu.memory_space<vmem>>, vector<2x16xf32>
    %c0_1 = arith.constant 0 : index
    %c0_2 = arith.constant 0 : index
    %1 = vector.load %arg2[%c0_1, %c0_2] : memref<120x32xf32, #tpu.memory_space<vmem>>, vector<16x32xf32>
    %cst = arith.constant dense<0.000000e+00> : vector<2x32xf32>
    %2 = tpu.matmul %0, %1, %cst {dimension_numbers = #tpu.dot_dimension_numbers<[1], [0], [0], [1], [0, 0, 1, 1], [], []>} : vector<2x16xf32>, vector<16x32xf32>, vector<2x32xf32> -> vector<2x32xf32>
    %c88 = arith.constant 88 : index
    %c0_3 = arith.constant 0 : index
    %3 = vector.load %arg2[%c88, %c0_3] : memref<120x32xf32, #tpu.memory_space<vmem>>, vector<1x32xf32>
    %4 = vector.broadcast %3 : vector<1x32xf32> to vector<2x32xf32>
    %5 = arith.addf %2, %4 : vector<2x32xf32>
    %cst_4 = arith.constant 0.000000e+00 : f32
    %6 = vector.broadcast %cst_4 : f32 to vector<2x32xf32>
    %7 = arith.maximumf %5, %6 : vector<2x32xf32>
    %c16 = arith.constant 16 : index
    %c0_5 = arith.constant 0 : index
    %8 = vector.load %arg2[%c16, %c0_5] : memref<120x32xf32, #tpu.memory_space<vmem>>, vector<32x32xf32>
    %cst_6 = arith.constant dense<0.000000e+00> : vector<2x32xf32>
    %9 = tpu.matmul %7, %8, %cst_6 {dimension_numbers = #tpu.dot_dimension_numbers<[1], [0], [0], [1], [0, 0, 1, 1], [], []>} : vector<2x32xf32>, vector<32x32xf32>, vector<2x32xf32> -> vector<2x32xf32>
    %c96 = arith.constant 96 : index
    %c0_7 = arith.constant 0 : index
    %10 = vector.load %arg2[%c96, %c0_7] : memref<120x32xf32, #tpu.memory_space<vmem>>, vector<1x32xf32>
    %11 = vector.broadcast %10 : vector<1x32xf32> to vector<2x32xf32>
    %12 = arith.addf %9, %11 : vector<2x32xf32>
    %cst_8 = arith.constant 0.000000e+00 : f32
    %13 = vector.broadcast %cst_8 : f32 to vector<2x32xf32>
    %14 = arith.maximumf %12, %13 : vector<2x32xf32>
    %c48 = arith.constant 48 : index
    %c0_9 = arith.constant 0 : index
    %15 = vector.load %arg2[%c48, %c0_9] : memref<120x32xf32, #tpu.memory_space<vmem>>, vector<32x32xf32>
    %cst_10 = arith.constant dense<0.000000e+00> : vector<2x32xf32>
    %16 = tpu.matmul %14, %15, %cst_10 {dimension_numbers = #tpu.dot_dimension_numbers<[1], [0], [0], [1], [0, 0, 1, 1], [], []>} : vector<2x32xf32>, vector<32x32xf32>, vector<2x32xf32> -> vector<2x32xf32>
    %c104 = arith.constant 104 : index
    %c0_11 = arith.constant 0 : index
    %17 = vector.load %arg2[%c104, %c0_11] : memref<120x32xf32, #tpu.memory_space<vmem>>, vector<1x32xf32>
    %18 = vector.broadcast %17 : vector<1x32xf32> to vector<2x32xf32>
    %19 = arith.addf %16, %18 : vector<2x32xf32>
    %cst_12 = arith.constant 0.000000e+00 : f32
    %20 = vector.broadcast %cst_12 : f32 to vector<2x32xf32>
    %21 = arith.maximumf %19, %20 : vector<2x32xf32>
    %c80 = arith.constant 80 : index
    %c0_13 = arith.constant 0 : index
    %22 = vector.load %arg2[%c80, %c0_13] : memref<120x32xf32, #tpu.memory_space<vmem>>, vector<1x32xf32>
    %23 = vector.broadcast %22 : vector<1x32xf32> to vector<2x32xf32>
    %24 = arith.mulf %21, %23 : vector<2x32xf32>
    %cst_14 = arith.constant dense<0.000000e+00> : vector<2xf32>
    %25 = vector.multi_reduction <add>, %24, %cst_14 [1] : vector<2x32xf32> to vector<2xf32>
    %26 = vector.shape_cast %25 : vector<2xf32> to vector<2x1xf32>
    %c112 = arith.constant 112 : index
    %c0_15 = arith.constant 0 : index
    %27 = vector.load %arg2[%c112, %c0_15] : memref<120x32xf32, #tpu.memory_space<vmem>>, vector<1x1xf32>
    %28 = vector.broadcast %27 : vector<1x1xf32> to vector<2x1xf32>
    %29 = arith.addf %26, %28 : vector<2x1xf32>
    %c0_16 = arith.constant 0 : index
    %c0_17 = arith.constant 0 : index
    %30 = vector.load %arg3[%c0_16, %c0_17] : memref<2x1xf32, #tpu.memory_space<vmem>>, vector<2x1xf32>
    tpu.vector_store %arg3[%c0_16, %c0_17], %29 {strides = array<i32>} : memref<2x1xf32, #tpu.memory_space<vmem>>, vector<2x1xf32>,
    return
  }
  func.func @transform_0(%arg0: i32) -> (i32, i32) {
    %c0_i32 = arith.constant 0 : i32
    %c0_i32_0 = arith.constant 0 : i32
    return %arg0, %c0_i32 : i32, i32
  }
  func.func @transform_1(%arg0: i32) -> (i32, i32) {
    %c0_i32 = arith.constant 0 : i32
    %c0_i32_0 = arith.constant 0 : i32
    %c0_i32_1 = arith.constant 0 : i32
    return %c0_i32, %c0_i32_0 : i32, i32
  }
  func.func @transform_2(%arg0: i32) -> (i32, i32) {
    %c0_i32 = arith.constant 0 : i32
    %c0_i32_0 = arith.constant 0 : i32
    return %arg0, %c0_i32 : i32, i32
  }
}

</mosaic_0001>

<llo_original>
// kernel: tpu_custom_call.1
$region0: #{tpu_custom_call.1}
  #allocation0 [shape = 'u32[]', space=smem, size = 0x4, offset = 0x4, fixed_abs, tag = 'smem constant byte address 0x4 - core index']
  #allocation1 [shape = 'u32[144,128]{1,0:T(1,128)}', space=vmem, size = 0x12000, scoped, tag = 'internal scratch']
  %s0 = inlined_call_operand.vmem [shape: f32[2,16], index: 0, kind: input, shape index: {}]
  %s1 = inlined_call_operand.vmem [shape: f32[120,32], index: 1, kind: input, shape index: {}]
  %s2 = inlined_call_operand.vmem [shape: f32[2,1], index: 2, kind: output, shape index: {}]
  %s3 = sld [smem:[#allocation0]]
  $region18: #{tpu_custom_call.1} parent=0
    _
  %s5 = ssub.s32 1, %s3
  %s6 = scalar_select 0, %s5, %s3
  // Predicated region
  $region2: #{tpu_custom_call.1} parent=0 // pred_check
    _
  $region3: #{tpu_custom_call.1} parent=0 // pred_check_branch
    %8 = sbr.rel (0) target = $region5
  $region4: #{tpu_custom_call.1} parent=0 // pred_region
    _
  $region5: #{tpu_custom_call.1} parent=0 // pred_fallthru
    _
  // Predicated region
  $region6: #{tpu_custom_call.1} parent=0 // pred_check
    _
  $region7: #{tpu_custom_call.1} parent=0 // pred_check_branch
    %10 = sbr.rel (0) target = $region9
  $region8: #{tpu_custom_call.1} parent=0 // pred_region
    _
  $region9: #{tpu_custom_call.1} parent=0 // pred_fallthru
    _
  %v11 = vld [vmem:[%s0] sm:$0x3]
  %v12 = vld [vmem:[%s1] sm:$0xff]
  %v13 = vld [vmem:[%s1 + $0x8] sm:$0xff]
  %v14 = vld [vmem:[%s1 + $0x58] sm:$0x1]
  %v15 = vlaneseq
  %v16 = vshrl.u32 %v15, 7
  %v17 = vsub.s32 0, %v16
  %v18 = vrot.slane %v14, %v17
  %vm19 = vcmask 130048
  %v21 = vsel %vm19, %v11, 0
  %23 = vmatprep.subr.mxu0 0.0
  %24 = vmatpush1.msra.mxu0 %v12
  %25 = vmatprep.subr.mxu0 0.0
  %26 = vmatpush1.msra.mxu0 %v13
  %27 = vmatprep.subr.mxu0 0.0
  %28 = vmatpush1.msra.mxu0 0.0
  %29 = vmatprep.subr.mxu0 0.0
  %30 = vmatpush1.msra.mxu0 0.0
  %31 = vmatprep.subr.mxu0 0.0
  %32 = vmatpush1.msra.mxu0 0.0
  %33 = vmatprep.subr.mxu0 0.0
  %34 = vmatpush1.msra.mxu0 0.0
  %35 = vmatprep.subr.mxu0 0.0
  %36 = vmatpush1.msra.mxu0 0.0
  %37 = vmatprep.subr.mxu0 0.0
  %38 = vmatpush1.msra.mxu0 0.0
  %39 = vmatprep.subr.mxu0 0.0
  %40 = vmatpush1.msra.mxu0 0.0
  %41 = vmatprep.subr.mxu0 0.0
  %42 = vmatpush1.msra.mxu0 0.0
  %43 = vmatprep.subr.mxu0 0.0
  %44 = vmatpush1.msra.mxu0 0.0
  %45 = vmatprep.subr.mxu0 0.0
  %46 = vmatpush1.msra.mxu0 0.0
  %47 = vmatprep.subr.mxu0 0.0
  %48 = vmatpush1.msra.mxu0 0.0
  %49 = vmatprep.subr.mxu0 0.0
  %50 = vmatpush1.msra.mxu0 0.0
  %51 = vmatprep.subr.mxu0 0.0
  %52 = vmatpush1.msra.mxu0 0.0
  %53 = vmatprep.subr.mxu0 0.0
  %54 = vmatpush1.msra.mxu0 0.0
  %55 = vmatprep.subr.mxu0 0.0
  %56 = vmatpush1.msra.mxu0 0.0
  %57 = vmatprep.subr.mxu0 0.0
  %58 = vmatpush1.msra.mxu0 0.0
  %59 = vmatprep.subr.mxu0 0.0
  %60 = vmatpush1.msra.mxu0 0.0
  %61 = vmatprep.subr.mxu0 0.0
  %62 = vmatpush1.msra.mxu0 0.0
  %63 = vmatprep.subr.mxu0 0.0
  %64 = vmatpush1.msra.mxu0 0.0
  %65 = vmatprep.subr.mxu0 0.0
  %66 = vmatpush1.msra.mxu0 0.0
  %67 = vmatprep.subr.mxu0 0.0
  %68 = vmatpush1.msra.mxu0 0.0
  %69 = vmatprep.subr.mxu0 0.0
  %70 = vmatpush1.msra.mxu0 0.0
  %71 = vmatprep.subr.mxu0 0.0
  %72 = vmatpush1.msra.mxu0 0.0
  %73 = vmatprep.subr.mxu0 0.0
  %74 = vmatpush1.msra.mxu0 0.0
  %75 = vmatprep.subr.mxu0 0.0
  %76 = vmatpush1.msra.mxu0 0.0
  %77 = vmatprep.subr.mxu0 0.0
  %78 = vmatpush1.msra.mxu0 0.0
  %79 = vmatprep.subr.mxu0 0.0
  %80 = vmatpush1.msra.mxu0 0.0
  %81 = vmatprep.subr.mxu0 0.0
  %82 = vmatpush1.msra.mxu0 0.0
  %83 = vmatprep.subr.mxu0 0.0
  %84 = vmatpush1.msra.mxu0 0.0
  %85 = vmatprep.subr.mxu0 0.0
  %86 = vmatpush1.msra.mxu0 0.0
  %87 = vmatprep.mubr.f32.mxu0 0.0
  %88 = vmatmul.mubr.f32.gmra.mrb[0].mxu0 %v21
  %v89 = vpop.f32.mrb[0].mxu0
  %v90 = vadd.f32 %v18, %v89
  %v91 = vpop.f32.mrb[0].mxu0
  %92 = vdwg.mxu0
  %v93 = vmax.f32 %v90, 0.0
  %v94 = vld [vmem:[%s1 + $0x10] sm:$0xff]
  %v95 = vld [vmem:[%s1 + $0x18] sm:$0xff]
  %v96 = vld [vmem:[%s1 + $0x20] sm:$0xff]
  %v97 = vld [vmem:[%s1 + $0x28] sm:$0xff]
  %v98 = vld [vmem:[%s1 + $0x60] sm:$0x1]
  %v99 = vlaneseq
  %v100 = vshrl.u32 %v99, 7
  %v101 = vsub.s32 0, %v100
  %v102 = vrot.slane %v98, %v101
  %vm103 = vcmask 261120
  %v105 = vsel %vm103, %v93, 0
  %107 = vmatprep.subr.mxu0 0.0
  %108 = vmatpush1.msra.mxu0 %v94
  %109 = vmatprep.subr.mxu0 0.0
  %110 = vmatpush1.msra.mxu0 %v95
  %111 = vmatprep.subr.mxu0 0.0
  %112 = vmatpush1.msra.mxu0 %v96
  %113 = vmatprep.subr.mxu0 0.0
  %114 = vmatpush1.msra.mxu0 %v97
  %115 = vmatprep.subr.mxu0 0.0
  %116 = vmatpush1.msra.mxu0 0.0
  %117 = vmatprep.subr.mxu0 0.0
  %118 = vmatpush1.msra.mxu0 0.0
  %119 = vmatprep.subr.mxu0 0.0
  %120 = vmatpush1.msra.mxu0 0.0
  %121 = vmatprep.subr.mxu0 0.0
  %122 = vmatpush1.msra.mxu0 0.0
  %123 = vmatprep.subr.mxu0 0.0
  %124 = vmatpush1.msra.mxu0 0.0
  %125 = vmatprep.subr.mxu0 0.0
  %126 = vmatpush1.msra.mxu0 0.0
  %127 = vmatprep.subr.mxu0 0.0
  %128 = vmatpush1.msra.mxu0 0.0
  %129 = vmatprep.subr.mxu0 0.0
  %130 = vmatpush1.msra.mxu0 0.0
  %131 = vmatprep.subr.mxu0 0.0
  %132 = vmatpush1.msra.mxu0 0.0
  %133 = vmatprep.subr.mxu0 0.0
  %134 = vmatpush1.msra.mxu0 0.0
  %135 = vmatprep.subr.mxu0 0.0
  %136 = vmatpush1.msra.mxu0 0.0
  %137 = vmatprep.subr.mxu0 0.0
  %138 = vmatpush1.msra.mxu0 0.0
  %139 = vmatprep.subr.mxu0 0.0
  %140 = vmatpush1.msra.mxu0 0.0
  %141 = vmatprep.subr.mxu0 0.0
  %142 = vmatpush1.msra.mxu0 0.0
  %143 = vmatprep.subr.mxu0 0.0
  %144 = vmatpush1.msra.mxu0 0.0
  %145 = vmatprep.subr.mxu0 0.0
  %146 = vmatpush1.msra.mxu0 0.0
  %147 = vmatprep.subr.mxu0 0.0
  %148 = vmatpush1.msra.mxu0 0.0
  %149 = vmatprep.subr.mxu0 0.0
  %150 = vmatpush1.msra.mxu0 0.0
  %151 = vmatprep.subr.mxu0 0.0
  %152 = vmatpush1.msra.mxu0 0.0
  %153 = vmatprep.subr.mxu0 0.0
  %154 = vmatpush1.msra.mxu0 0.0
  %155 = vmatprep.subr.mxu0 0.0
  %156 = vmatpush1.msra.mxu0 0.0
  %157 = vmatprep.subr.mxu0 0.0
  %158 = vmatpush1.msra.mxu0 0.0
  %159 = vmatprep.subr.mxu0 0.0
  %160 = vmatpush1.msra.mxu0 0.0
  %161 = vmatprep.subr.mxu0 0.0
  %162 = vmatpush1.msra.mxu0 0.0
  %163 = vmatprep.subr.mxu0 0.0
  %164 = vmatpush1.msra.mxu0 0.0
  %165 = vmatprep.subr.mxu0 0.0
  %166 = vmatpush1.msra.mxu0 0.0
  %167 = vmatprep.subr.mxu0 0.0
  %168 = vmatpush1.msra.mxu0 0.0
  %169 = vmatprep.subr.mxu0 0.0
  %170 = vmatpush1.msra.mxu0 0.0
  %171 = vmatprep.mubr.f32.mxu0 0.0
  %172 = vmatmul.mubr.f32.gmra.mrb[0].mxu0 %v105
  %v173 = vpop.f32.mrb[0].mxu0
  %v174 = vadd.f32 %v102, %v173
  %v175 = vpop.f32.mrb[0].mxu0
  %176 = vdwg.mxu0
  %v177 = vmax.f32 %v174, 0.0
  %v178 = vld [vmem:[%s1 + $0x30] sm:$0xff]
  %v179 = vld [vmem:[%s1 + $0x38] sm:$0xff]
  %v180 = vld [vmem:[%s1 + $0x40] sm:$0xff]
  %v181 = vld [vmem:[%s1 + $0x48] sm:$0xff]
  %v182 = vld [vmem:[%s1 + $0x68] sm:$0x1]
  %v183 = vlaneseq
  %v184 = vshrl.u32 %v183, 7
  %v185 = vsub.s32 0, %v184
  %v186 = vrot.slane %v182, %v185
  %v188 = vsel %vm103, %v177, 0
  %190 = vmatprep.subr.mxu0 0.0
  %191 = vmatpush1.msra.mxu0 %v178
  %192 = vmatprep.subr.mxu0 0.0
  %193 = vmatpush1.msra.mxu0 %v179
  %194 = vmatprep.subr.mxu0 0.0
  %195 = vmatpush1.msra.mxu0 %v180
  %196 = vmatprep.subr.mxu0 0.0
  %197 = vmatpush1.msra.mxu0 %v181
  %198 = vmatprep.subr.mxu0 0.0
  %199 = vmatpush1.msra.mxu0 0.0
  %200 = vmatprep.subr.mxu0 0.0
  %201 = vmatpush1.msra.mxu0 0.0
  %202 = vmatprep.subr.mxu0 0.0
  %203 = vmatpush1.msra.mxu0 0.0
  %204 = vmatprep.subr.mxu0 0.0
  %205 = vmatpush1.msra.mxu0 0.0
  %206 = vmatprep.subr.mxu0 0.0
  %207 = vmatpush1.msra.mxu0 0.0
  %208 = vmatprep.subr.mxu0 0.0
  %209 = vmatpush1.msra.mxu0 0.0
  %210 = vmatprep.subr.mxu0 0.0
  %211 = vmatpush1.msra.mxu0 0.0
  %212 = vmatprep.subr.mxu0 0.0
  %213 = vmatpush1.msra.mxu0 0.0
  %214 = vmatprep.subr.mxu0 0.0
  %215 = vmatpush1.msra.mxu0 0.0
  %216 = vmatprep.subr.mxu0 0.0
  %217 = vmatpush1.msra.mxu0 0.0
  %218 = vmatprep.subr.mxu0 0.0
  %219 = vmatpush1.msra.mxu0 0.0
  %220 = vmatprep.subr.mxu0 0.0
  %221 = vmatpush1.msra.mxu0 0.0
  %222 = vmatprep.subr.mxu0 0.0
  %223 = vmatpush1.msra.mxu0 0.0
  %224 = vmatprep.subr.mxu0 0.0
  %225 = vmatpush1.msra.mxu0 0.0
  %226 = vmatprep.subr.mxu0 0.0
  %227 = vmatpush1.msra.mxu0 0.0
  %228 = vmatprep.subr.mxu0 0.0
  %229 = vmatpush1.msra.mxu0 0.0
  %230 = vmatprep.subr.mxu0 0.0
  %231 = vmatpush1.msra.mxu0 0.0
  %232 = vmatprep.subr.mxu0 0.0
  %233 = vmatpush1.msra.mxu0 0.0
  %234 = vmatprep.subr.mxu0 0.0
  %235 = vmatpush1.msra.mxu0 0.0
  %236 = vmatprep.subr.mxu0 0.0
  %237 = vmatpush1.msra.mxu0 0.0
  %238 = vmatprep.subr.mxu0 0.0
  %239 = vmatpush1.msra.mxu0 0.0
  %240 = vmatprep.subr.mxu0 0.0
  %241 = vmatpush1.msra.mxu0 0.0
  %242 = vmatprep.subr.mxu0 0.0
  %243 = vmatpush1.msra.mxu0 0.0
  %244 = vmatprep.subr.mxu0 0.0
  %245 = vmatpush1.msra.mxu0 0.0
  %246 = vmatprep.subr.mxu0 0.0
  %247 = vmatpush1.msra.mxu0 0.0
  %248 = vmatprep.subr.mxu0 0.0
  %249 = vmatpush1.msra.mxu0 0.0
  %250 = vmatprep.subr.mxu0 0.0
  %251 = vmatpush1.msra.mxu0 0.0
  %252 = vmatprep.subr.mxu0 0.0
  %253 = vmatpush1.msra.mxu0 0.0
  %254 = vmatprep.mubr.f32.mxu0 0.0
  %255 = vmatmul.mubr.f32.gmra.mrb[0].mxu0 %v188
  %v256 = vpop.f32.mrb[0].mxu0
  %v257 = vadd.f32 %v186, %v256
  %v258 = vpop.f32.mrb[0].mxu0
  %259 = vdwg.mxu0
  %v260 = vmax.f32 %v257, 0.0
  %v261 = vld [vmem:[%s1 + $0x50] sm:$0x1]
  %v262 = vlaneseq
  %v263 = vshrl.u32 %v262, 7
  %v264 = vsub.s32 0, %v263
  %v265 = vrot.slane %v261, %v264
  %v266 = vmul.f32 %v260, %v265
  %vm267 = vcmask 254976
  %v268 = vsel %vm267, %v266, 0.0
  %269 = vadd.xlane.f32.xlu0 %v268
  %v270 = vpop.xlane.xlu0 %269
  %v271 = vld [vmem:[%s1 + $0x70] sm:$0x1]
  %v272 = vlaneseq
  %v273 = vshrl.u32 %v272, 7
  %v274 = vsub.s32 0, %v273
  %v275 = vrot.slane %v271, %v274
  %v276 = vadd.f32 %v270, %v275
  %vm277 = vcmask 1024
  %278 = vst.msk [vmem:[%s2] sm:$0x3] %vm277, %v276
  // Predicated region
  $region10: #{tpu_custom_call.1} parent=0 // pred_check
    _
  $region11: #{tpu_custom_call.1} parent=0 // pred_check_branch
    %280 = sbr.rel (0) target = $region13
  $region12: #{tpu_custom_call.1} parent=0 // pred_region
    _
  $region13: #{tpu_custom_call.1} parent=0 // pred_fallthru
    _
  // Predicated region
  $region14: #{tpu_custom_call.1} parent=0 // pred_check
    _
  $region15: #{tpu_custom_call.1} parent=0 // pred_check_branch
    %282 = sbr.rel (0) target = $region17
  $region16: #{tpu_custom_call.1} parent=0 // pred_region
    _
  $region17: #{tpu_custom_call.1} parent=0 // pred_fallthru
    _

</llo_original>
